<compile_context>
chip_gen: v5e
topology: v5e:2x2
jax: 0.10.0
libtpu: 0.0.40
codegen_flags: <defaults>
</compile_context>

<pallas_src>
import jax
import jax.numpy as jnp
from jax.experimental import pallas as pl
from jax.experimental.pallas import tpu as pltpu


def _round_up(x, m):
    return (x + m - 1) // m * m


def _vmem_capacity_bytes():
    try:
        return int(pltpu.get_tpu_info().vmem_capacity_bytes)
    except Exception:
        return 64 * 1024 * 1024  # conservative (v7x-sized) fallback


def _choose_batch_tile(B, Dp, hidden, max_tb, vmem_budget_bytes):
    """Largest batch tile (multiple of 8) whose working set fits the budget."""
    def tile_bytes(tb):
        pooled = tb * Dp * 2 * 2          # bf16 pooled tile, double-buffered
        w_embed = Dp * hidden * 2         # bf16 embed weight, single-buffered
        w_fc = hidden * 4                 # f32 fc weight row
        feats = tb * hidden * 4           # f32 feature intermediate
        out = tb * 4 * 2                  # f32 scores, double-buffered
        return pooled + w_embed + w_fc + feats + out

    tb = _round_up(min(max_tb, _round_up(B, 8)), 8)
    while tb > 8 and tile_bytes(tb) > vmem_budget_bytes:
        tb -= 8
    return tb


def hps_kernel(pooled_ref, w_embed_ref, w_fc_ref, c_ref, out_ref):
    # pooled_ref : (TB, Dp)   bf16   mean-pooled flattened patches
    # w_embed_ref: (Dp, H)    bf16   stand-in patch-embedding weight (VMEM-resident)
    # w_fc_ref   : (1, H)     f32    PyTorch fc.weight, shape (1, 1024)
    # c_ref      : (1, 1)     f32    folded bias: sum(b_embed*w_fc) + b_fc  (SMEM)
    # out_ref    : (TB, 1)    f32
    feats = jnp.dot(pooled_ref[...], w_embed_ref[...],
                    preferred_element_type=jnp.float32)              # (TB, H) MXU, f32 acc
    # fc head (Linear(1024, 1)) off the MXU: VPU multiply + lane reduction.
    scores = jnp.sum(feats * w_fc_ref[...], axis=-1, keepdims=True)  # (TB, 1)
    out_ref[...] = (scores + c_ref[0, 0]).astype(out_ref.dtype)


def hps_v2_forward(image, params, *, patch=8, batch_tile=256):
    """image: (B, C, H, W) float32 (NCHW, like PyTorch). Returns scores (B, 1)."""
    B, C, H, W = image.shape
    ph = pw = patch
    nh, nw = H // ph, W // pw
    P = nh * nw
    Dp = C * ph * pw

    w_embed, b_embed, w_fc, b_fc = params
    hidden = w_embed.shape[1]
    assert w_embed.shape == (Dp, hidden)

    # Patch extraction + mean-pool fused in the wrapper (one HBM read of the
    # image; the kernel then streams only (B, Dp) bf16).  Exact because both
    # pooling and the stand-in embed are linear.
    x = image.reshape(B, C, nh, ph, nw, pw)
    x = jnp.transpose(x, (0, 2, 4, 1, 3, 5)).reshape(B, P, Dp)
    pooled = jnp.mean(x, axis=1, dtype=jnp.float32)                  # (B, Dp) f32

    # Fold biases: sum((f + b_embed) * w_fc) + b_fc == sum(f * w_fc) + c.
    c = (jnp.sum(b_embed.reshape(-1).astype(jnp.float32)
                 * w_fc.reshape(-1).astype(jnp.float32))
         + b_fc.reshape(()).astype(jnp.float32)).reshape(1, 1)

    # Generation-aware VMEM sizing (v7x: 64 MiB physical; v5e/v6e: 128 MiB).
    vmem_cap = _vmem_capacity_bytes()
    vmem_limit = min((vmem_cap * 3) // 4, 112 * 1024 * 1024)
    vmem_budget = max(vmem_limit - (4 << 20), 8 << 20)

    TB = _choose_batch_tile(B, Dp, hidden, batch_tile, vmem_budget)
    # Keep >=2 grid steps when possible so both v7x TensorCores get work.
    if _round_up(B, TB) // TB < 2 and TB > 8:
        TB = max(8, _round_up((TB + 1) // 2, 8))
    B_pad = _round_up(B, TB)
    if B_pad != B:
        pooled = jnp.pad(pooled, ((0, B_pad - B), (0, 0)))

    pooled_bf16 = pooled.astype(jnp.bfloat16)        # halves the dominant HBM stream
    w_embed_bf16 = w_embed.astype(jnp.bfloat16)
    w_fc_f32 = w_fc.astype(jnp.float32).reshape(1, hidden)

    grid = (B_pad // TB,)
    out = pl.pallas_call(
        hps_kernel,
        out_shape=jax.ShapeDtypeStruct((B_pad, 1), jnp.float32),
        grid_spec=pltpu.PrefetchScalarGridSpec(
            num_scalar_prefetch=0,
            grid=grid,
            in_specs=[
                # pooled patch rows stream per batch tile (double-buffered)
                pl.BlockSpec((TB, Dp), lambda i: (i, 0)),
                # embed weight: constant index_map, single-buffered VMEM resident
                pl.BlockSpec((Dp, hidden), lambda i: (0, 0),
                             pipeline_mode=pl.Buffered(1)),
                # fc weight row (tiny, f32)
                pl.BlockSpec((1, hidden), lambda i: (0, 0)),
                # folded bias scalar in SMEM
                pl.BlockSpec(memory_space=pltpu.MemorySpace.SMEM),
            ],
            out_specs=pl.BlockSpec((TB, 1), lambda i: (i, 0)),
        ),
        compiler_params=pltpu.CompilerParams(
            dimension_semantics=("parallel",),   # shard batch tiles across TCs (v7x)
            vmem_limit_bytes=vmem_limit,
        ),
    )(pooled_bf16, w_embed_bf16, w_fc_f32, c)
    return out[:B]


def hps_v2_reference(image, params, *, patch=8):
    """Pure-JAX f32 reference of the stand-in forward pass."""
    B, C, H, W = image.shape
    ph = pw = patch
    nh, nw = H // ph, W // pw
    P = nh * nw
    Dp = C * ph * pw
    w_embed, b_embed, w_fc, b_fc = params
    x = image.reshape(B, C, nh, ph, nw, pw)
    x = jnp.transpose(x, (0, 2, 4, 1, 3, 5)).reshape(B, P, Dp)
    feats = jnp.mean(x, axis=1) @ w_embed + b_embed                  # (B, 1024)
    return feats @ w_fc.reshape(-1, 1) + b_fc.reshape(1, 1)          # (B, 1)


def init_params(key, *, in_dim, hidden=1024):
    k0, k1, k2, k3 = jax.random.split(key, 4)
    w_embed = jax.random.normal(k0, (in_dim, hidden), jnp.float32) * 0.02
    b_embed = jax.random.normal(k1, (1, hidden), jnp.float32) * 0.01
    # nn.Linear(1024, 1): weight (1, 1024), bias (1,)
    w_fc = jax.random.normal(k2, (1, hidden), jnp.float32) * 0.02
    b_fc = jax.random.normal(k3, (1, 1), jnp.float32) * 0.01
    return w_embed, b_embed, w_fc, b_fc


if __name__ == "__main__":
    key = jax.random.PRNGKey(0)
    k_img, k_par = jax.random.split(key)

    B, C, H, W = 2, 3, 16, 16
    patch = 8
    in_dim = C * patch * patch  # 192

    image = jax.random.normal(k_img, (B, C, H, W), jnp.float32)
    params = init_params(k_par, in_dim=in_dim, hidden=1024)

    scores = hps_v2_forward(image, params, patch=patch)
    scores = jax.block_until_ready(scores)
    assert scores.shape == (B, 1) and scores.dtype == jnp.float32

    ref = hps_v2_reference(image, params, patch=patch)
    # bf16 MXU inputs -> ~1e-2-level relative drift vs the f32 reference.
    assert jnp.allclose(scores, ref, rtol=2e-2, atol=2e-2), (scores, ref)
    print("KERNEL_OK")
</pallas_src>

<mosaic_0001>
module attributes {stable_mosaic.version = 11 : i64} {
  func.func @hps_kernel(%arg0: i32, %arg1: memref<8x192xbf16, #tpu.memory_space<vmem>>, %arg2: memref<192x1024xbf16, #tpu.memory_space<vmem>>, %arg3: memref<1x1024xf32, #tpu.memory_space<vmem>>, %arg4: memref<1x1xf32, #tpu.memory_space<smem>>, %arg5: memref<8x1xf32, #tpu.memory_space<vmem>>) attributes {dimension_semantics = [#tpu.dimension_semantics<parallel>], iteration_bounds = array<i64: 1>, scalar_prefetch = 0 : i64, scratch_operands = 0 : i64, tpu.core_type = #tpu.core_type<tc>, window_params = [{transform_indices = @transform_0, window_bounds = array<i64: 8, 192>}, {pipeline_mode = #tpu.pipeline_mode<synchronous>, transform_indices = @transform_1, window_bounds = array<i64: 192, 1024>}, {pipeline_mode = #tpu.pipeline_mode<synchronous>, transform_indices = @transform_2, window_bounds = array<i64: 1, 1024>}, {transform_indices = @transform_3, window_bounds = array<i64: 1, 1>}, {transform_indices = @transform_4, window_bounds = array<i64: 8, 1>}]} {
    %c0 = arith.constant 0 : index
    %c0_0 = arith.constant 0 : index
    %0 = vector.load %arg1[%c0, %c0_0] : memref<8x192xbf16, #tpu.memory_space<vmem>>, vector<8x192xbf16>
    %c0_1 = arith.constant 0 : index
    %c0_2 = arith.constant 0 : index
    %1 = vector.load %arg2[%c0_1, %c0_2] : memref<192x1024xbf16, #tpu.memory_space<vmem>>, vector<192x1024xbf16>
    %cst = arith.constant dense<0.000000e+00> : vector<8x1024xf32>
    %2 = tpu.matmul %0, %1, %cst {dimension_numbers = #tpu.dot_dimension_numbers<[1], [0], [0], [1], [0, 0, 1, 1], [], []>} : vector<8x192xbf16>, vector<192x1024xbf16>, vector<8x1024xf32> -> vector<8x1024xf32>
    %c0_3 = arith.constant 0 : index
    %c0_4 = arith.constant 0 : index
    %3 = vector.load %arg3[%c0_3, %c0_4] : memref<1x1024xf32, #tpu.memory_space<vmem>>, vector<1x1024xf32>
    %4 = vector.broadcast %3 : vector<1x1024xf32> to vector<8x1024xf32>
    %5 = arith.mulf %2, %4 : vector<8x1024xf32>
    %cst_5 = arith.constant dense<0.000000e+00> : vector<8xf32>
    %6 = vector.multi_reduction <add>, %5, %cst_5 [1] : vector<8x1024xf32> to vector<8xf32>
    %7 = vector.shape_cast %6 : vector<8xf32> to vector<8x1xf32>
    %c0_6 = arith.constant 0 : index
    %c0_7 = arith.constant 0 : index
    %8 = memref.load %arg4[%c0_6, %c0_7] : memref<1x1xf32, #tpu.memory_space<smem>>
    %9 = vector.broadcast %8 : f32 to vector<8x1xf32>
    %10 = arith.addf %7, %9 : vector<8x1xf32>
    %c0_8 = arith.constant 0 : index
    %c0_9 = arith.constant 0 : index
    %11 = vector.load %arg5[%c0_8, %c0_9] : memref<8x1xf32, #tpu.memory_space<vmem>>, vector<8x1xf32>
    tpu.vector_store %arg5[%c0_8, %c0_9], %10 {strides = array<i32>} : memref<8x1xf32, #tpu.memory_space<vmem>>, vector<8x1xf32>,
    return
  }
  func.func @transform_0(%arg0: i32) -> (i32, i32) {
    %c0_i32 = arith.constant 0 : i32
    %c0_i32_0 = arith.constant 0 : i32
    return %arg0, %c0_i32 : i32, i32
  }
  func.func @transform_1(%arg0: i32) -> (i32, i32) {
    %c0_i32 = arith.constant 0 : i32
    %c0_i32_0 = arith.constant 0 : i32
    %c0_i32_1 = arith.constant 0 : i32
    return %c0_i32, %c0_i32_0 : i32, i32
  }
  func.func @transform_2(%arg0: i32) -> (i32, i32) {
    %c0_i32 = arith.constant 0 : i32
    %c0_i32_0 = arith.constant 0 : i32
    %c0_i32_1 = arith.constant 0 : i32
    return %c0_i32, %c0_i32_0 : i32, i32
  }
  func.func @transform_3(%arg0: i32) -> (i32, i32) {
    %c0_i32 = arith.constant 0 : i32
    %c0_i32_0 = arith.constant 0 : i32
    %c0_i32_1 = arith.constant 0 : i32
    return %c0_i32, %c0_i32_0 : i32, i32
  }
  func.func @transform_4(%arg0: i32) -> (i32, i32) {
    %c0_i32 = arith.constant 0 : i32
    %c0_i32_0 = arith.constant 0 : i32
    return %arg0, %c0_i32 : i32, i32
  }
}

</mosaic_0001>

<llo_original>
// kernel: tpu_custom_call.1
$region0: #{tpu_custom_call.1}
  #allocation0 [shape = 'u32[]', space=smem, size = 0x4, offset = 0x4, fixed_abs, tag = 'smem constant byte address 0x4 - core index']
  #allocation1 [shape = 'u32[72,128]{1,0:T(1,128)}', space=vmem, size = 0x9000, scoped, tag = 'internal scratch']
  #allocation2 [shape = 'f32[1,1]{1,0:T(1,128)S(6)}', space=smem, size = 0x200, scoped, tag = 'scoped memory for tpu_custom_call.1']
  %s0 = inlined_call_operand.hbm [shape: bf16[8,192], index: 0, kind: input, shape index: {}]
  %s1 = inlined_call_operand.hbm [shape: bf16[192,1024], index: 1, kind: input, shape index: {}]
  %s2 = inlined_call_operand.hbm [shape: f32[1,1024], index: 2, kind: input, shape index: {}]
  %s3 = inlined_call_operand.<no memory space> [shape: f32[1,1], index: 3, kind: input, shape index: {}]
  %s4 = inlined_call_operand.vmem [shape: f32[8,1], index: 4, kind: output, shape index: {}]
  %s5 = sld [smem:[#allocation0]]
  $region38: #{tpu_custom_call.1} parent=0
    _
  %s7 = ssub.s32 1, %s5
  %s8 = scalar_select 0, %s7, %s5
  %9 = sst [smem:[#allocation2]] %s3
  $region1: #{tpu_custom_call.1} parent=0
    #allocation3 [shape = 'u8[4096]{0}', space=vmem, size = 0x1000, scoped, tag = 'input window, operand 0, single buffered']
    #allocation4 [shape = 's32[1]{0}', space=sflag, size = 0x4, scoped, tag = 'scoped memory for tpu_custom_call.1']
    #allocation5 [shape = 'u8[393216]{0}', space=vmem, size = 0x60000, scoped, tag = 'input window, operand 1, single buffered']
    #allocation6 [shape = 's32[1]{0}', space=sflag, size = 0x4, scoped, tag = 'scoped memory for tpu_custom_call.1']
    #allocation7 [shape = 'u8[4096]{0}', space=vmem, size = 0x1000, scoped, tag = 'input window, operand 2, single buffered']
    %10 = vsyncpa [#allocation4], 0
    %11 = vsyncpa [#allocation6], 0
    // Predicated region
    $region2: #{tpu_custom_call.1} parent=1 // pred_check
      _
    $region3: #{tpu_custom_call.1} parent=1 // pred_check_branch
      %13 = sbr.rel (0) target = $region5
    $region4: #{tpu_custom_call.1} parent=1 // pred_region
      %15 = vsyncadd [#allocation4], 0
      %s17 = sshll.u32 %s0, 4
      %s18 = int_to_ptr.hbm [resolvable:$true] %s17
      %s19 = sshll.u32 [#allocation3], 4
      %s20 = int_to_ptr.vmem [resolvable:$true] %s19
      %22 = dma.hbm_to_vmem [thread:$0]  %s18, 128, %s20, [#allocation4]
    $region5: #{tpu_custom_call.1} parent=1 // pred_fallthru
      _
    // Predicated region
    $region6: #{tpu_custom_call.1} parent=1 // pred_check
      _
    $region7: #{tpu_custom_call.1} parent=1 // pred_check_branch
      %24 = sbr.rel (0) target = $region9
    $region8: #{tpu_custom_call.1} parent=1 // pred_region
      %26 = vsyncadd [#allocation6], 0
      %s27 = sshll.u32 %s1, 4
      %s28 = int_to_ptr.hbm [resolvable:$true] %s27
      %s29 = sshll.u32 [#allocation5], 4
      %s30 = int_to_ptr.vmem [resolvable:$true] %s29
      %35 = dma.hbm_to_vmem [thread:$0]  %s28, 12288, %s30, [#allocation6], 512, 512, 32
    $region9: #{tpu_custom_call.1} parent=1 // pred_fallthru
      _
    // Predicated region
    $region10: #{tpu_custom_call.1} parent=1 // pred_check
      _
    $region11: #{tpu_custom_call.1} parent=1 // pred_check_branch
      %37 = sbr.rel (0) target = $region13
    $region12: #{tpu_custom_call.1} parent=1 // pred_region
      %39 = vsyncadd [#allocation6], 0
      %s41 = sshll.u32 %s2, 4
      %s42 = int_to_ptr.hbm [resolvable:$true] %s41
      %s43 = sshll.u32 [#allocation7], 4
      %s44 = int_to_ptr.vmem [resolvable:$true] %s43
      %46 = dma.hbm_to_vmem [thread:$0]  %s42, 128, %s44, [#allocation6]
    $region13: #{tpu_custom_call.1} parent=1 // pred_fallthru
      _
    // Predicated region
    $region14: #{tpu_custom_call.1} parent=1 // pred_check
      _
    $region15: #{tpu_custom_call.1} parent=1 // pred_check_branch
      %48 = sbr.rel (0) target = $region17
    $region16: #{tpu_custom_call.1} parent=1 // pred_region
      _
    $region17: #{tpu_custom_call.1} parent=1 // pred_fallthru
      _
    // Predicated region
    $region18: #{tpu_custom_call.1} parent=1 // pred_check
      _
    $region19: #{tpu_custom_call.1} parent=1 // pred_check_branch
      %50 = sbr.rel (0) target = $region21
    $region20: #{tpu_custom_call.1} parent=1 // pred_region
      %52 = dma.done [#allocation4], 128
    $region21: #{tpu_custom_call.1} parent=1 // pred_fallthru
      _
    // Predicated region
    $region22: #{tpu_custom_call.1} parent=1 // pred_check
      _
    $region23: #{tpu_custom_call.1} parent=1 // pred_check_branch
      %54 = sbr.rel (0) target = $region25
    $region24: #{tpu_custom_call.1} parent=1 // pred_region
      %56 = dma.done [#allocation6], 12288
    $region25: #{tpu_custom_call.1} parent=1 // pred_fallthru
      _
    // Predicated region
    $region26: #{tpu_custom_call.1} parent=1 // pred_check
      _
    $region27: #{tpu_custom_call.1} parent=1 // pred_check_branch
      %58 = sbr.rel (0) target = $region29
    $region28: #{tpu_custom_call.1} parent=1 // pred_region
      %60 = dma.done [#allocation6], 128
    $region29: #{tpu_custom_call.1} parent=1 // pred_fallthru
      _
    %v62 = vld [vmem:[#allocation3] sm:$0xff]
    %v63 = vld [vmem:[#allocation5] sm:$0xff]
    %v64 = vld [vmem:[#allocation5 + $0x8] sm:$0xff]
    %v65 = vld [vmem:[#allocation5 + $0x10] sm:$0xff]
    %v66 = vld [vmem:[#allocation5 + $0x18] sm:$0xff]
    %v67 = vld [vmem:[#allocation5 + $0x20] sm:$0xff]
    %v68 = vld [vmem:[#allocation5 + $0x28] sm:$0xff]
    %v69 = vld [vmem:[#allocation5 + $0x30] sm:$0xff]
    %v70 = vld [vmem:[#allocation5 + $0x38] sm:$0xff]
    %v71 = vld [vmem:[#allocation5 + $0x40] sm:$0xff]
    %v72 = vld [vmem:[#allocation5 + $0x48] sm:$0xff]
    %v73 = vld [vmem:[#allocation5 + $0x50] sm:$0xff]
    %v74 = vld [vmem:[#allocation5 + $0x58] sm:$0xff]
    %v75 = vld [vmem:[#allocation5 + $0x60] sm:$0xff]
    %v76 = vld [vmem:[#allocation5 + $0x68] sm:$0xff]
    %v77 = vld [vmem:[#allocation5 + $0x70] sm:$0xff]
    %v78 = vld [vmem:[#allocation5 + $0x78] sm:$0xff]
    %v79 = vld [vmem:[#allocation5 + $0x80] sm:$0xff]
    %v80 = vld [vmem:[#allocation5 + $0x88] sm:$0xff]
    %v81 = vld [vmem:[#allocation5 + $0x90] sm:$0xff]
    %v82 = vld [vmem:[#allocation5 + $0x98] sm:$0xff]
    %v83 = vld [vmem:[#allocation5 + $0xa0] sm:$0xff]
    %v84 = vld [vmem:[#allocation5 + $0xa8] sm:$0xff]
    %v85 = vld [vmem:[#allocation5 + $0xb0] sm:$0xff]
    %v86 = vld [vmem:[#allocation5 + $0xb8] sm:$0xff]
    %v87 = vld [vmem:[#allocation5 + $0xc0] sm:$0xff]
    %v88 = vld [vmem:[#allocation5 + $0xc8] sm:$0xff]
    %v89 = vld [vmem:[#allocation5 + $0xd0] sm:$0xff]
    %v90 = vld [vmem:[#allocation5 + $0xd8] sm:$0xff]
    %v91 = vld [vmem:[#allocation5 + $0xe0] sm:$0xff]
    %v92 = vld [vmem:[#allocation5 + $0xe8] sm:$0xff]
    %v93 = vld [vmem:[#allocation5 + $0xf0] sm:$0xff]
    %v94 = vld [vmem:[#allocation5 + $0xf8] sm:$0xff]
    %v95 = vld [vmem:[#allocation5 + $0x100] sm:$0xff]
    %v96 = vld [vmem:[#allocation5 + $0x108] sm:$0xff]
    %v97 = vld [vmem:[#allocation5 + $0x110] sm:$0xff]
    %v98 = vld [vmem:[#allocation5 + $0x118] sm:$0xff]
    %v99 = vld [vmem:[#allocation5 + $0x120] sm:$0xff]
    %v100 = vld [vmem:[#allocation5 + $0x128] sm:$0xff]
    %v101 = vld [vmem:[#allocation5 + $0x130] sm:$0xff]
    %v102 = vld [vmem:[#allocation5 + $0x138] sm:$0xff]
    %v103 = vld [vmem:[#allocation5 + $0x140] sm:$0xff]
    %v104 = vld [vmem:[#allocation5 + $0x148] sm:$0xff]
    %v105 = vld [vmem:[#allocation5 + $0x150] sm:$0xff]
    %v106 = vld [vmem:[#allocation5 + $0x158] sm:$0xff]
    %v107 = vld [vmem:[#allocation5 + $0x160] sm:$0xff]
    %v108 = vld [vmem:[#allocation5 + $0x168] sm:$0xff]
    %v109 = vld [vmem:[#allocation5 + $0x170] sm:$0xff]
    %v110 = vld [vmem:[#allocation5 + $0x178] sm:$0xff]
    %v111 = vld [vmem:[#allocation5 + $0x180] sm:$0xff]
    %v112 = vld [vmem:[#allocation5 + $0x188] sm:$0xff]
    %v113 = vld [vmem:[#allocation5 + $0x190] sm:$0xff]
    %v114 = vld [vmem:[#allocation5 + $0x198] sm:$0xff]
    %v115 = vld [vmem:[#allocation5 + $0x1a0] sm:$0xff]
    %v116 = vld [vmem:[#allocation5 + $0x1a8] sm:$0xff]
    %v117 = vld [vmem:[#allocation5 + $0x1b0] sm:$0xff]
    %v118 = vld [vmem:[#allocation5 + $0x1b8] sm:$0xff]
    %v119 = vld [vmem:[#allocation5 + $0x1c0] sm:$0xff]
    %v120 = vld [vmem:[#allocation5 + $0x1c8] sm:$0xff]
    %v121 = vld [vmem:[#allocation5 + $0x1d0] sm:$0xff]
    %v122 = vld [vmem:[#allocation5 + $0x1d8] sm:$0xff]
    %v123 = vld [vmem:[#allocation5 + $0x1e0] sm:$0xff]
    %v124 = vld [vmem:[#allocation5 + $0x1e8] sm:$0xff]
    %v125 = vld [vmem:[#allocation5 + $0x1f0] sm:$0xff]
    %v126 = vld [vmem:[#allocation5 + $0x1f8] sm:$0xff]
    %v127 = vld [vmem:[#allocation5 + $0x200] sm:$0xff]
    %v128 = vld [vmem:[#allocation5 + $0x208] sm:$0xff]
    %v129 = vld [vmem:[#allocation5 + $0x210] sm:$0xff]
    %v130 = vld [vmem:[#allocation5 + $0x218] sm:$0xff]
    %v131 = vld [vmem:[#allocation5 + $0x220] sm:$0xff]
    %v132 = vld [vmem:[#allocation5 + $0x228] sm:$0xff]
    %v133 = vld [vmem:[#allocation5 + $0x230] sm:$0xff]
    %v134 = vld [vmem:[#allocation5 + $0x238] sm:$0xff]
    %v135 = vld [vmem:[#allocation5 + $0x240] sm:$0xff]
    %v136 = vld [vmem:[#allocation5 + $0x248] sm:$0xff]
    %v137 = vld [vmem:[#allocation5 + $0x250] sm:$0xff]
    %v138 = vld [vmem:[#allocation5 + $0x258] sm:$0xff]
    %v139 = vld [vmem:[#allocation5 + $0x260] sm:$0xff]
    %v140 = vld [vmem:[#allocation5 + $0x268] sm:$0xff]
    %v141 = vld [vmem:[#allocation5 + $0x270] sm:$0xff]
    %v142 = vld [vmem:[#allocation5 + $0x278] sm:$0xff]
    %v143 = vld [vmem:[#allocation5 + $0x280] sm:$0xff]
    %v144 = vld [vmem:[#allocation5 + $0x288] sm:$0xff]
    %v145 = vld [vmem:[#allocation5 + $0x290] sm:$0xff]
    %v146 = vld [vmem:[#allocation5 + $0x298] sm:$0xff]
    %v147 = vld [vmem:[#allocation5 + $0x2a0] sm:$0xff]
    %v148 = vld [vmem:[#allocation5 + $0x2a8] sm:$0xff]
    %v149 = vld [vmem:[#allocation5 + $0x2b0] sm:$0xff]
    %v150 = vld [vmem:[#allocation5 + $0x2b8] sm:$0xff]
    %v151 = vld [vmem:[#allocation5 + $0x2c0] sm:$0xff]
    %v152 = vld [vmem:[#allocation5 + $0x2c8] sm:$0xff]
    %v153 = vld [vmem:[#allocation5 + $0x2d0] sm:$0xff]
    %v154 = vld [vmem:[#allocation5 + $0x2d8] sm:$0xff]
    %v155 = vld [vmem:[#allocation5 + $0x2e0] sm:$0xff]
    %v156 = vld [vmem:[#allocation5 + $0x2e8] sm:$0xff]
    %v157 = vld [vmem:[#allocation5 + $0x2f0] sm:$0xff]
    %v158 = vld [vmem:[#allocation5 + $0x2f8] sm:$0xff]
    %v160 = vunpack.c.l.b16 %v62
    %v161 = vunpack.c.h.b16 %v62
    %v162 = vpack.c.b16 %v160, %v160
    %v163 = vpack.c.b16 %v161, %v161
    %v261 = vunpack.c.l.b16 %v63
    %v262 = vunpack.c.h.b16 %v63
    %v263 = vunpack.c.l.b16 %v64
    %v264 = vunpack.c.h.b16 %v64
    %v265 = vunpack.c.l.b16 %v65
    %v266 = vunpack.c.h.b16 %v65
    %v267 = vunpack.c.l.b16 %v66
    %v268 = vunpack.c.h.b16 %v66
    %v269 = vunpack.c.l.b16 %v67
    %v270 = vunpack.c.h.b16 %v67
    %v271 = vunpack.c.l.b16 %v68
    %v272 = vunpack.c.h.b16 %v68
    %v273 = vunpack.c.l.b16 %v69
    %v274 = vunpack.c.h.b16 %v69
    %v275 = vunpack.c.l.b16 %v70
    %v276 = vunpack.c.h.b16 %v70
    %v277 = vunpack.c.l.b16 %v71
    %v278 = vunpack.c.h.b16 %v71
    %v279 = vunpack.c.l.b16 %v72
    %v280 = vunpack.c.h.b16 %v72
    %v281 = vunpack.c.l.b16 %v73
    %v282 = vunpack.c.h.b16 %v73
    %v283 = vunpack.c.l.b16 %v74
    %v284 = vunpack.c.h.b16 %v74
    %v285 = vunpack.c.l.b16 %v75
    %v286 = vunpack.c.h.b16 %v75
    %v287 = vunpack.c.l.b16 %v76
    %v288 = vunpack.c.h.b16 %v76
    %v289 = vunpack.c.l.b16 %v77
    %v290 = vunpack.c.h.b16 %v77
    %v291 = vunpack.c.l.b16 %v78
    %v292 = vunpack.c.h.b16 %v78
    %v293 = vunpack.c.l.b16 %v79
    %v294 = vunpack.c.h.b16 %v79
    %v295 = vunpack.c.l.b16 %v80
    %v296 = vunpack.c.h.b16 %v80
    %v297 = vunpack.c.l.b16 %v81
    %v298 = vunpack.c.h.b16 %v81
    %v299 = vunpack.c.l.b16 %v82
    %v300 = vunpack.c.h.b16 %v82
    %v301 = vunpack.c.l.b16 %v83
    %v302 = vunpack.c.h.b16 %v83
    %v303 = vunpack.c.l.b16 %v84
    %v304 = vunpack.c.h.b16 %v84
    %v305 = vunpack.c.l.b16 %v85
    %v306 = vunpack.c.h.b16 %v85
    %v307 = vunpack.c.l.b16 %v86
    %v308 = vunpack.c.h.b16 %v86
    %v309 = vunpack.c.l.b16 %v87
    %v310 = vunpack.c.h.b16 %v87
    %v311 = vunpack.c.l.b16 %v88
    %v312 = vunpack.c.h.b16 %v88
    %v313 = vunpack.c.l.b16 %v89
    %v314 = vunpack.c.h.b16 %v89
    %v315 = vunpack.c.l.b16 %v90
    %v316 = vunpack.c.h.b16 %v90
    %v317 = vunpack.c.l.b16 %v91
    %v318 = vunpack.c.h.b16 %v91
    %v319 = vunpack.c.l.b16 %v92
    %v320 = vunpack.c.h.b16 %v92
    %v321 = vunpack.c.l.b16 %v93
    %v322 = vunpack.c.h.b16 %v93
    %v323 = vunpack.c.l.b16 %v94
    %v324 = vunpack.c.h.b16 %v94
    %v325 = vunpack.c.l.b16 %v95
    %v326 = vunpack.c.h.b16 %v95
    %v327 = vunpack.c.l.b16 %v96
    %v328 = vunpack.c.h.b16 %v96
    %v329 = vunpack.c.l.b16 %v97
    %v330 = vunpack.c.h.b16 %v97
    %v331 = vunpack.c.l.b16 %v98
    %v332 = vunpack.c.h.b16 %v98
    %v333 = vunpack.c.l.b16 %v99
    %v334 = vunpack.c.h.b16 %v99
    %v335 = vunpack.c.l.b16 %v100
    %v336 = vunpack.c.h.b16 %v100
    %v337 = vunpack.c.l.b16 %v101
    %v338 = vunpack.c.h.b16 %v101
    %v339 = vunpack.c.l.b16 %v102
    %v340 = vunpack.c.h.b16 %v102
    %v341 = vunpack.c.l.b16 %v103
    %v342 = vunpack.c.h.b16 %v103
    %v343 = vunpack.c.l.b16 %v104
    %v344 = vunpack.c.h.b16 %v104
    %v345 = vunpack.c.l.b16 %v105
    %v346 = vunpack.c.h.b16 %v105
    %v347 = vunpack.c.l.b16 %v106
    %v348 = vunpack.c.h.b16 %v106
    %v349 = vunpack.c.l.b16 %v107
    %v350 = vunpack.c.h.b16 %v107
    %v351 = vunpack.c.l.b16 %v108
    %v352 = vunpack.c.h.b16 %v108
    %v353 = vunpack.c.l.b16 %v109
    %v354 = vunpack.c.h.b16 %v109
    %v355 = vunpack.c.l.b16 %v110
    %v356 = vunpack.c.h.b16 %v110
    %v357 = vunpack.c.l.b16 %v111
    %v358 = vunpack.c.h.b16 %v111
    %v359 = vunpack.c.l.b16 %v112
    %v360 = vunpack.c.h.b16 %v112
    %v361 = vunpack.c.l.b16 %v113
    %v362 = vunpack.c.h.b16 %v113
    %v363 = vunpack.c.l.b16 %v114
    %v364 = vunpack.c.h.b16 %v114
    %v365 = vunpack.c.l.b16 %v115
    %v366 = vunpack.c.h.b16 %v115
    %v367 = vunpack.c.l.b16 %v116
    %v368 = vunpack.c.h.b16 %v116
    %v369 = vunpack.c.l.b16 %v117
    %v370 = vunpack.c.h.b16 %v117
    %v371 = vunpack.c.l.b16 %v118
    %v372 = vunpack.c.h.b16 %v118
    %v373 = vunpack.c.l.b16 %v119
    %v374 = vunpack.c.h.b16 %v119
    %v375 = vunpack.c.l.b16 %v120
    %v376 = vunpack.c.h.b16 %v120
    %v377 = vunpack.c.l.b16 %v121
    %v378 = vunpack.c.h.b16 %v121
    %v379 = vunpack.c.l.b16 %v122
    %v380 = vunpack.c.h.b16 %v122
    %v381 = vunpack.c.l.b16 %v123
    %v382 = vunpack.c.h.b16 %v123
    %v383 = vunpack.c.l.b16 %v124
    %v384 = vunpack.c.h.b16 %v124
    %v385 = vunpack.c.l.b16 %v125
    %v386 = vunpack.c.h.b16 %v125
    %v387 = vunpack.c.l.b16 %v126
    %v388 = vunpack.c.h.b16 %v126
    %v389 = vunpack.c.l.b16 %v127
    %v390 = vunpack.c.h.b16 %v127
    %v391 = vunpack.c.l.b16 %v128
    %v392 = vunpack.c.h.b16 %v128
    %v393 = vunpack.c.l.b16 %v129
    %v394 = vunpack.c.h.b16 %v129
    %v395 = vunpack.c.l.b16 %v130
    %v396 = vunpack.c.h.b16 %v130
    %v397 = vunpack.c.l.b16 %v131
    %v398 = vunpack.c.h.b16 %v131
    %v399 = vunpack.c.l.b16 %v132
    %v400 = vunpack.c.h.b16 %v132
    %v401 = vunpack.c.l.b16 %v133
    %v402 = vunpack.c.h.b16 %v133
    %v403 = vunpack.c.l.b16 %v134
    %v404 = vunpack.c.h.b16 %v134
    %v405 = vunpack.c.l.b16 %v135
    %v406 = vunpack.c.h.b16 %v135
    %v407 = vunpack.c.l.b16 %v136
    %v408 = vunpack.c.h.b16 %v136
    %v409 = vunpack.c.l.b16 %v137
    %v410 = vunpack.c.h.b16 %v137
    %v411 = vunpack.c.l.b16 %v138
    %v412 = vunpack.c.h.b16 %v138
    %v413 = vunpack.c.l.b16 %v139
    %v414 = vunpack.c.h.b16 %v139
    %v415 = vunpack.c.l.b16 %v140
    %v416 = vunpack.c.h.b16 %v140
    %v417 = vunpack.c.l.b16 %v141
    %v418 = vunpack.c.h.b16 %v141
    %v419 = vunpack.c.l.b16 %v142
    %v420 = vunpack.c.h.b16 %v142
    %v421 = vunpack.c.l.b16 %v143
    %v422 = vunpack.c.h.b16 %v143
    %v423 = vunpack.c.l.b16 %v144
    %v424 = vunpack.c.h.b16 %v144
    %v425 = vunpack.c.l.b16 %v145
    %v426 = vunpack.c.h.b16 %v145
    %v427 = vunpack.c.l.b16 %v146
    %v428 = vunpack.c.h.b16 %v146
    %v429 = vunpack.c.l.b16 %v147
    %v430 = vunpack.c.h.b16 %v147
    %v431 = vunpack.c.l.b16 %v148
    %v432 = vunpack.c.h.b16 %v148
    %v433 = vunpack.c.l.b16 %v149
    %v434 = vunpack.c.h.b16 %v149
    %v435 = vunpack.c.l.b16 %v150
    %v436 = vunpack.c.h.b16 %v150
    %v437 = vunpack.c.l.b16 %v151
    %v438 = vunpack.c.h.b16 %v151
    %v439 = vunpack.c.l.b16 %v152
    %v440 = vunpack.c.h.b16 %v152
    %v441 = vunpack.c.l.b16 %v153
    %v442 = vunpack.c.h.b16 %v153
    %v443 = vunpack.c.l.b16 %v154
    %v444 = vunpack.c.h.b16 %v154
    %v445 = vunpack.c.l.b16 %v155
    %v446 = vunpack.c.h.b16 %v155
    %v447 = vunpack.c.l.b16 %v156
    %v448 = vunpack.c.h.b16 %v156
    %v449 = vunpack.c.l.b16 %v157
    %v450 = vunpack.c.h.b16 %v157
    %v451 = vunpack.c.l.b16 %v158
    %v452 = vunpack.c.h.b16 %v158
    %v453 = vpack.c.b16 %v269, %v261
    %v454 = vpack.c.b16 %v270, %v262
    %v455 = vpack.c.b16 %v271, %v263
    %v456 = vpack.c.b16 %v272, %v264
    %v457 = vpack.c.b16 %v273, %v265
    %v458 = vpack.c.b16 %v274, %v266
    %v459 = vpack.c.b16 %v275, %v267
    %v460 = vpack.c.b16 %v276, %v268
    %v461 = vpack.c.b16 %v285, %v277
    %v462 = vpack.c.b16 %v286, %v278
    %v463 = vpack.c.b16 %v287, %v279
    %v464 = vpack.c.b16 %v288, %v280
    %v465 = vpack.c.b16 %v289, %v281
    %v466 = vpack.c.b16 %v290, %v282
    %v467 = vpack.c.b16 %v291, %v283
    %v468 = vpack.c.b16 %v292, %v284
    %v469 = vpack.c.b16 %v301, %v293
    %v470 = vpack.c.b16 %v302, %v294
    %v471 = vpack.c.b16 %v303, %v295
    %v472 = vpack.c.b16 %v304, %v296
    %v473 = vpack.c.b16 %v305, %v297
    %v474 = vpack.c.b16 %v306, %v298
    %v475 = vpack.c.b16 %v307, %v299
    %v476 = vpack.c.b16 %v308, %v300
    %v477 = vpack.c.b16 %v317, %v309
    %v478 = vpack.c.b16 %v318, %v310
    %v479 = vpack.c.b16 %v319, %v311
    %v480 = vpack.c.b16 %v320, %v312
    %v481 = vpack.c.b16 %v321, %v313
    %v482 = vpack.c.b16 %v322, %v314
    %v483 = vpack.c.b16 %v323, %v315
    %v484 = vpack.c.b16 %v324, %v316
    %v485 = vpack.c.b16 %v333, %v325
    %v486 = vpack.c.b16 %v334, %v326
    %v487 = vpack.c.b16 %v335, %v327
    %v488 = vpack.c.b16 %v336, %v328
    %v489 = vpack.c.b16 %v337, %v329
    %v490 = vpack.c.b16 %v338, %v330
    %v491 = vpack.c.b16 %v339, %v331
    %v492 = vpack.c.b16 %v340, %v332
    %v493 = vpack.c.b16 %v349, %v341
    %v494 = vpack.c.b16 %v350, %v342
    %v495 = vpack.c.b16 %v351, %v343
    %v496 = vpack.c.b16 %v352, %v344
    %v497 = vpack.c.b16 %v353, %v345
    %v498 = vpack.c.b16 %v354, %v346
    %v499 = vpack.c.b16 %v355, %v347
    %v500 = vpack.c.b16 %v356, %v348
    %v501 = vpack.c.b16 %v365, %v357
    %v502 = vpack.c.b16 %v366, %v358
    %v503 = vpack.c.b16 %v367, %v359
    %v504 = vpack.c.b16 %v368, %v360
    %v505 = vpack.c.b16 %v369, %v361
    %v506 = vpack.c.b16 %v370, %v362
    %v507 = vpack.c.b16 %v371, %v363
    %v508 = vpack.c.b16 %v372, %v364
    %v509 = vpack.c.b16 %v381, %v373
    %v510 = vpack.c.b16 %v382, %v374
    %v511 = vpack.c.b16 %v383, %v375
    %v512 = vpack.c.b16 %v384, %v376
    %v513 = vpack.c.b16 %v385, %v377
    %v514 = vpack.c.b16 %v386, %v378
    %v515 = vpack.c.b16 %v387, %v379
    %v516 = vpack.c.b16 %v388, %v380
    %v517 = vpack.c.b16 %v397, %v389
    %v518 = vpack.c.b16 %v398, %v390
    %v519 = vpack.c.b16 %v399, %v391
    %v520 = vpack.c.b16 %v400, %v392
    %v521 = vpack.c.b16 %v401, %v393
    %v522 = vpack.c.b16 %v402, %v394
    %v523 = vpack.c.b16 %v403, %v395
    %v524 = vpack.c.b16 %v404, %v396
    %v525 = vpack.c.b16 %v413, %v405
    %v526 = vpack.c.b16 %v414, %v406
    %v527 = vpack.c.b16 %v415, %v407
    %v528 = vpack.c.b16 %v416, %v408
    %v529 = vpack.c.b16 %v417, %v409
    %v530 = vpack.c.b16 %v418, %v410
    %v531 = vpack.c.b16 %v419, %v411
    %v532 = vpack.c.b16 %v420, %v412
    %v533 = vpack.c.b16 %v429, %v421
    %v534 = vpack.c.b16 %v430, %v422
    %v535 = vpack.c.b16 %v431, %v423
    %v536 = vpack.c.b16 %v432, %v424
    %v537 = vpack.c.b16 %v433, %v425
    %v538 = vpack.c.b16 %v434, %v426
    %v539 = vpack.c.b16 %v435, %v427
    %v540 = vpack.c.b16 %v436, %v428
    %v541 = vpack.c.b16 %v445, %v437
    %v542 = vpack.c.b16 %v446, %v438
    %v543 = vpack.c.b16 %v447, %v439
    %v544 = vpack.c.b16 %v448, %v440
    %v545 = vpack.c.b16 %v449, %v441
    %v546 = vpack.c.b16 %v450, %v442
    %v547 = vpack.c.b16 %v451, %v443
    %v548 = vpack.c.b16 %v452, %v444
    %vm645 = vcmask 523264
    %v647 = vsel %vm645, %v163, 0
    %649 = vmatpush.bf16.msra.mxu0 %v509
    %650 = vmatpush.bf16.msra.mxu0 %v501
    %651 = vmatpush.bf16.msra.mxu0 %v493
    %652 = vmatpush.bf16.msra.mxu0 %v485
    %653 = vmatpush.bf16.msra.mxu0 %v477
    %654 = vmatpush.bf16.msra.mxu0 %v469
    %655 = vmatpush.bf16.msra.mxu0 %v461
    %656 = vmatpush.bf16.msra.mxu0 %v453
    %657 = vmatmul.bf16.gmra.mxu0 %v162
    %v658 = vpop.f32.mrf.mxu0
    %v659 = vadd.f32 0.0, %v658
    %v660 = vpop.f32.mrf.mxu0
    %661 = vdwg.mxu0
    %662 = vmatpush.bf16.msra.mxu0 0
    %663 = vmatpush.bf16.msra.mxu0 0
    %664 = vmatpush.bf16.msra.mxu0 0
    %665 = vmatpush.bf16.msra.mxu0 0
    %666 = vmatpush.bf16.msra.mxu0 %v541
    %667 = vmatpush.bf16.msra.mxu0 %v533
    %668 = vmatpush.bf16.msra.mxu0 %v525
    %669 = vmatpush.bf16.msra.mxu0 %v517
    %670 = vmatmul.bf16.gmra.mxu0 %v647
    %v671 = vpop.f32.mrf.mxu0
    %v672 = vadd.f32 %v659, %v671
    %v673 = vpop.f32.mrf.mxu0
    %674 = vdwg.mxu0
    %675 = vmatpush.bf16.msra.mxu0 %v510
    %676 = vmatpush.bf16.msra.mxu0 %v502
    %677 = vmatpush.bf16.msra.mxu0 %v494
    %678 = vmatpush.bf16.msra.mxu0 %v486
    %679 = vmatpush.bf16.msra.mxu0 %v478
    %680 = vmatpush.bf16.msra.mxu0 %v470
    %681 = vmatpush.bf16.msra.mxu0 %v462
    %682 = vmatpush.bf16.msra.mxu0 %v454
    %683 = vmatmul.bf16.gmra.mxu0 %v162
    %v684 = vpop.f32.mrf.mxu0
    %v685 = vadd.f32 0.0, %v684
    %v686 = vpop.f32.mrf.mxu0
    %687 = vdwg.mxu0
    %688 = vmatpush.bf16.msra.mxu0 0
    %689 = vmatpush.bf16.msra.mxu0 0
    %690 = vmatpush.bf16.msra.mxu0 0
    %691 = vmatpush.bf16.msra.mxu0 0
    %692 = vmatpush.bf16.msra.mxu0 %v542
    %693 = vmatpush.bf16.msra.mxu0 %v534
    %694 = vmatpush.bf16.msra.mxu0 %v526
    %695 = vmatpush.bf16.msra.mxu0 %v518
    %696 = vmatmul.bf16.gmra.mxu0 %v647
    %v697 = vpop.f32.mrf.mxu0
    %v698 = vadd.f32 %v685, %v697
    %v699 = vpop.f32.mrf.mxu0
    %700 = vdwg.mxu0
    %701 = vmatpush.bf16.msra.mxu0 %v511
    %702 = vmatpush.bf16.msra.mxu0 %v503
    %703 = vmatpush.bf16.msra.mxu0 %v495
    %704 = vmatpush.bf16.msra.mxu0 %v487
    %705 = vmatpush.bf16.msra.mxu0 %v479
    %706 = vmatpush.bf16.msra.mxu0 %v471
    %707 = vmatpush.bf16.msra.mxu0 %v463
    %708 = vmatpush.bf16.msra.mxu0 %v455
    %709 = vmatmul.bf16.gmra.mxu0 %v162
    %v710 = vpop.f32.mrf.mxu0
    %v711 = vadd.f32 0.0, %v710
    %v712 = vpop.f32.mrf.mxu0
    %713 = vdwg.mxu0
    %714 = vmatpush.bf16.msra.mxu0 0
    %715 = vmatpush.bf16.msra.mxu0 0
    %716 = vmatpush.bf16.msra.mxu0 0
    %717 = vmatpush.bf16.msra.mxu0 0
    %718 = vmatpush.bf16.msra.mxu0 %v543
    %719 = vmatpush.bf16.msra.mxu0 %v535
    %720 = vmatpush.bf16.msra.mxu0 %v527
    %721 = vmatpush.bf16.msra.mxu0 %v519
    %722 = vmatmul.bf16.gmra.mxu0 %v647
    %v723 = vpop.f32.mrf.mxu0
    %v724 = vadd.f32 %v711, %v723
    %v725 = vpop.f32.mrf.mxu0
    %726 = vdwg.mxu0
    %727 = vmatpush.bf16.msra.mxu0 %v512
    %728 = vmatpush.bf16.msra.mxu0 %v504
    %729 = vmatpush.bf16.msra.mxu0 %v496
    %730 = vmatpush.bf16.msra.mxu0 %v488
    %731 = vmatpush.bf16.msra.mxu0 %v480
    %732 = vmatpush.bf16.msra.mxu0 %v472
    %733 = vmatpush.bf16.msra.mxu0 %v464
    %734 = vmatpush.bf16.msra.mxu0 %v456
    %735 = vmatmul.bf16.gmra.mxu0 %v162
    %v736 = vpop.f32.mrf.mxu0
    %v737 = vadd.f32 0.0, %v736
    %v738 = vpop.f32.mrf.mxu0
    %739 = vdwg.mxu0
    %740 = vmatpush.bf16.msra.mxu0 0
    %741 = vmatpush.bf16.msra.mxu0 0
    %742 = vmatpush.bf16.msra.mxu0 0
    %743 = vmatpush.bf16.msra.mxu0 0
    %744 = vmatpush.bf16.msra.mxu0 %v544
    %745 = vmatpush.bf16.msra.mxu0 %v536
    %746 = vmatpush.bf16.msra.mxu0 %v528
    %747 = vmatpush.bf16.msra.mxu0 %v520
    %748 = vmatmul.bf16.gmra.mxu0 %v647
    %v749 = vpop.f32.mrf.mxu0
    %v750 = vadd.f32 %v737, %v749
    %v751 = vpop.f32.mrf.mxu0
    %752 = vdwg.mxu0
    %753 = vmatpush.bf16.msra.mxu0 %v513
    %754 = vmatpush.bf16.msra.mxu0 %v505
    %755 = vmatpush.bf16.msra.mxu0 %v497
    %756 = vmatpush.bf16.msra.mxu0 %v489
    %757 = vmatpush.bf16.msra.mxu0 %v481
    %758 = vmatpush.bf16.msra.mxu0 %v473
    %759 = vmatpush.bf16.msra.mxu0 %v465
    %760 = vmatpush.bf16.msra.mxu0 %v457
    %761 = vmatmul.bf16.gmra.mxu0 %v162
    %v762 = vpop.f32.mrf.mxu0
    %v763 = vadd.f32 0.0, %v762
    %v764 = vpop.f32.mrf.mxu0
    %765 = vdwg.mxu0
    %766 = vmatpush.bf16.msra.mxu0 0
    %767 = vmatpush.bf16.msra.mxu0 0
    %768 = vmatpush.bf16.msra.mxu0 0
    %769 = vmatpush.bf16.msra.mxu0 0
    %770 = vmatpush.bf16.msra.mxu0 %v545
    %771 = vmatpush.bf16.msra.mxu0 %v537
    %772 = vmatpush.bf16.msra.mxu0 %v529
    %773 = vmatpush.bf16.msra.mxu0 %v521
    %774 = vmatmul.bf16.gmra.mxu0 %v647
    %v775 = vpop.f32.mrf.mxu0
    %v776 = vadd.f32 %v763, %v775
    %v777 = vpop.f32.mrf.mxu0
    %778 = vdwg.mxu0
    %779 = vmatpush.bf16.msra.mxu0 %v514
    %780 = vmatpush.bf16.msra.mxu0 %v506
    %781 = vmatpush.bf16.msra.mxu0 %v498
    %782 = vmatpush.bf16.msra.mxu0 %v490
    %783 = vmatpush.bf16.msra.mxu0 %v482
    %784 = vmatpush.bf16.msra.mxu0 %v474
    %785 = vmatpush.bf16.msra.mxu0 %v466
    %786 = vmatpush.bf16.msra.mxu0 %v458
    %787 = vmatmul.bf16.gmra.mxu0 %v162
    %v788 = vpop.f32.mrf.mxu0
    %v789 = vadd.f32 0.0, %v788
    %v790 = vpop.f32.mrf.mxu0
    %791 = vdwg.mxu0
    %792 = vmatpush.bf16.msra.mxu0 0
    %793 = vmatpush.bf16.msra.mxu0 0
    %794 = vmatpush.bf16.msra.mxu0 0
    %795 = vmatpush.bf16.msra.mxu0 0
    %796 = vmatpush.bf16.msra.mxu0 %v546
    %797 = vmatpush.bf16.msra.mxu0 %v538
    %798 = vmatpush.bf16.msra.mxu0 %v530
    %799 = vmatpush.bf16.msra.mxu0 %v522
    %800 = vmatmul.bf16.gmra.mxu0 %v647
    %v801 = vpop.f32.mrf.mxu0
    %v802 = vadd.f32 %v789, %v801
    %v803 = vpop.f32.mrf.mxu0
    %804 = vdwg.mxu0
    %805 = vmatpush.bf16.msra.mxu0 %v515
    %806 = vmatpush.bf16.msra.mxu0 %v507
    %807 = vmatpush.bf16.msra.mxu0 %v499
    %808 = vmatpush.bf16.msra.mxu0 %v491
    %809 = vmatpush.bf16.msra.mxu0 %v483
    %810 = vmatpush.bf16.msra.mxu0 %v475
    %811 = vmatpush.bf16.msra.mxu0 %v467
    %812 = vmatpush.bf16.msra.mxu0 %v459
    %813 = vmatmul.bf16.gmra.mxu0 %v162
    %v814 = vpop.f32.mrf.mxu0
    %v815 = vadd.f32 0.0, %v814
    %v816 = vpop.f32.mrf.mxu0
    %817 = vdwg.mxu0
    %818 = vmatpush.bf16.msra.mxu0 0
    %819 = vmatpush.bf16.msra.mxu0 0
    %820 = vmatpush.bf16.msra.mxu0 0
    %821 = vmatpush.bf16.msra.mxu0 0
    %822 = vmatpush.bf16.msra.mxu0 %v547
    %823 = vmatpush.bf16.msra.mxu0 %v539
    %824 = vmatpush.bf16.msra.mxu0 %v531
    %825 = vmatpush.bf16.msra.mxu0 %v523
    %826 = vmatmul.bf16.gmra.mxu0 %v647
    %v827 = vpop.f32.mrf.mxu0
    %v828 = vadd.f32 %v815, %v827
    %v829 = vpop.f32.mrf.mxu0
    %830 = vdwg.mxu0
    %831 = vmatpush.bf16.msra.mxu0 %v516
    %832 = vmatpush.bf16.msra.mxu0 %v508
    %833 = vmatpush.bf16.msra.mxu0 %v500
    %834 = vmatpush.bf16.msra.mxu0 %v492
    %835 = vmatpush.bf16.msra.mxu0 %v484
    %836 = vmatpush.bf16.msra.mxu0 %v476
    %837 = vmatpush.bf16.msra.mxu0 %v468
    %838 = vmatpush.bf16.msra.mxu0 %v460
    %839 = vmatmul.bf16.gmra.mxu0 %v162
    %v840 = vpop.f32.mrf.mxu0
    %v841 = vadd.f32 0.0, %v840
    %v842 = vpop.f32.mrf.mxu0
    %843 = vdwg.mxu0
    %844 = vmatpush.bf16.msra.mxu0 0
    %845 = vmatpush.bf16.msra.mxu0 0
    %846 = vmatpush.bf16.msra.mxu0 0
    %847 = vmatpush.bf16.msra.mxu0 0
    %848 = vmatpush.bf16.msra.mxu0 %v548
    %849 = vmatpush.bf16.msra.mxu0 %v540
    %850 = vmatpush.bf16.msra.mxu0 %v532
    %851 = vmatpush.bf16.msra.mxu0 %v524
    %852 = vmatmul.bf16.gmra.mxu0 %v647
    %v853 = vpop.f32.mrf.mxu0
    %v854 = vadd.f32 %v841, %v853
    %v855 = vpop.f32.mrf.mxu0
    %856 = vdwg.mxu0
    %v857 = vld [vmem:[#allocation7] sm:$0xff]
    %v859 = vperm.slane %v857, 0
    %v860 = vperm.slane %v857, 1
    %v861 = vperm.slane %v857, 2
    %v862 = vperm.slane %v857, 3
    %v863 = vperm.slane %v857, 4
    %v864 = vperm.slane %v857, 5
    %v865 = vperm.slane %v857, 6
    %v866 = vperm.slane %v857, 7
    %v875 = vmul.f32 %v672, %v859
    %v876 = vmul.f32 %v698, %v860
    %v877 = vmul.f32 %v724, %v861
    %v878 = vmul.f32 %v750, %v862
    %v879 = vmul.f32 %v776, %v863
    %v880 = vmul.f32 %v802, %v864
    %v881 = vmul.f32 %v828, %v865
    %v882 = vmul.f32 %v854, %v866
    %v883 = vadd.f32 %v875, %v876
    %v884 = vadd.f32 %v883, %v877
    %v885 = vadd.f32 %v884, %v878
    %v886 = vadd.f32 %v885, %v879
    %v887 = vadd.f32 %v886, %v880
    %v888 = vadd.f32 %v887, %v881
    %v889 = vadd.f32 %v888, %v882
    %890 = vadd.xlane.f32.xlu0 %v889
    %v891 = vpop.xlane.xlu0 %890
    %s892 = sld [smem:[#allocation2]]
    %v893 = vstv %s892
    %v894 = vadd.f32 %v891, %v893
    %vm895 = vcmask 7168
    %896 = vst.msk [vmem:[%s4] sm:$0xff] %vm895, %v894
    // Predicated region
    $region30: #{tpu_custom_call.1} parent=1 // pred_check
      _
    $region31: #{tpu_custom_call.1} parent=1 // pred_check_branch
      %898 = sbr.rel (0) target = $region33
    $region32: #{tpu_custom_call.1} parent=1 // pred_region
      _
    $region33: #{tpu_custom_call.1} parent=1 // pred_fallthru
      _
    // Predicated region
    $region34: #{tpu_custom_call.1} parent=1 // pred_check
      _
    $region35: #{tpu_custom_call.1} parent=1 // pred_check_branch
      %900 = sbr.rel (0) target = $region37
    $region36: #{tpu_custom_call.1} parent=1 // pred_region
      _
    $region37: #{tpu_custom_call.1} parent=1 // pred_fallthru
      _
    %901 = vsyncpa [#allocation4], 1
    %902 = vsyncpa [#allocation6], 1

</llo_original>
